<compile_context>
chip_gen: v5e
topology: v5e:2x2
jax: 0.10.0
libtpu: 0.0.40
codegen_flags: <defaults>
</compile_context>

<pallas_src>
import functools

import jax
import jax.numpy as jnp
from jax.experimental import pallas as pl
from jax.experimental.pallas import tpu as pltpu


def _round_up(x, m):
    return (x + m - 1) // m * m


def _cdiv(a, b):
    return -(-a // b)


def _default_pack(embed_dim):
    """Lane-packing factor: how many embedding rows share one output row."""
    try:
        kind = jax.devices()[0].device_kind.lower()
    except Exception:
        kind = ""
    # 256-wide MXU on v6e / v7x; 128-wide elsewhere (v5e, v4, interpret, ...).
    target_lanes = 256 if ("v6" in kind or "v7" in kind) else 128
    for lanes in (target_lanes, 128):
        if embed_dim <= lanes and lanes % embed_dim == 0:
            return lanes // embed_dim
    # TODO(synk): lane-sparse fallback (masked stores) when embed_dim does not
    # pack evenly into 128/256 lanes.
    return 1


def _packed_embed_kernel(idx_ref, w_ref, o_ref, *, num_classes, pack):
    # idx_ref: (tile_rows, pack) int32      -- `pack` original indices per row
    # w_ref:   (pack*num_classes, pack*embed_dim) block-diagonal table
    # o_ref:   (tile_rows, pack*embed_dim)  -- lane-dense output tile
    idx = idx_ref[...]
    tile_rows = idx.shape[0]
    n_slots = w_ref.shape[0]

    # Narrow (tile, pack) work: per-column slot offsets + validity clamp.
    # Invalid (negative or >= num_classes) indices map to target -1, which
    # matches no slot -> all-zero embedding row.
    offs = (jnp.arange(pack, dtype=jnp.int32) * num_classes)[None, :]
    valid = (idx >= 0) & (idx < num_classes)
    targets = jnp.where(valid, idx + offs, -1)

    # One-hot over the packed slot axis.  Column j only ever matches slots
    # [j*num_classes, (j+1)*num_classes), so the `pack` masks are disjoint and
    # a logical OR builds the full one-hot with no cross-lane traffic.
    slots = jax.lax.broadcasted_iota(jnp.int32, (tile_rows, n_slots), 1)
    onehot = None
    for j in range(pack):
        hit = slots == targets[:, j:j + 1]
        onehot = hit if onehot is None else (onehot | hit)

    o_ref[...] = jnp.dot(
        onehot.astype(w_ref.dtype), w_ref[...],
        preferred_element_type=jnp.float32,
    ).astype(o_ref.dtype)


@functools.partial(jax.jit, static_argnames=("pack", "max_tile_rows", "out_dtype"))
def _lulc_embedding_impl(x, weight, *, pack, max_tile_rows, out_dtype):
    orig_shape = x.shape
    num_classes, embed_dim = weight.shape
    out_dtype = weight.dtype if out_dtype is None else jnp.dtype(out_dtype)

    idx = x.reshape(-1).astype(jnp.int32)
    n = idx.shape[0]

    # ---- balanced tiling --------------------------------------------------
    n_rows = _cdiv(n, pack)                        # packed output rows
    n_tiles = _cdiv(n_rows, max_tile_rows)
    if n_rows > 8:
        n_tiles = max(n_tiles, 2)                  # keep both v7x TCs busy
        n_tiles = _round_up(n_tiles, 2)            # even split across 2 TCs
    tile_rows = _round_up(_cdiv(n_rows, n_tiles), 8)
    n_rows_pad = tile_rows * n_tiles

    pad = n_rows_pad * pack - n
    if pad:
        # Padded tail indices are 0; those rows are sliced off below.
        idx = jnp.pad(idx, (0, pad))
    idx2d = idx.reshape(n_rows_pad, pack)

    # Block-diagonal packed table: (pack*num_classes, pack*embed_dim).
    w = weight.astype(out_dtype)
    w_packed = jnp.kron(jnp.eye(pack, dtype=w.dtype), w)
    n_slots = pack * num_classes
    packed_dim = pack * embed_dim

    # ---- explicit VMEM budget (double-buffered tiles + one-hot scratch) ----
    itemsize = jnp.dtype(out_dtype).itemsize
    out_tile_b = tile_rows * packed_dim * itemsize
    idx_tile_b = tile_rows * 128 * 4               # (tile, pack) lane-pads to 128
    w_b = n_slots * packed_dim * itemsize
    scratch_b = 3 * tile_rows * n_slots * 4        # iota + one-hot + slack
    vmem_limit = 2 * out_tile_b + 2 * idx_tile_b + 2 * w_b + scratch_b + (4 << 20)
    vmem_limit = int(min(max(vmem_limit, 32 << 20), 96 << 20))

    cost = pl.CostEstimate(
        flops=2 * n_rows_pad * n_slots * packed_dim,
        transcendentals=0,
        bytes_accessed=(idx2d.size * 4
                        + n_slots * packed_dim * itemsize
                        + n_rows_pad * packed_dim * itemsize),
    )

    kernel = functools.partial(
        _packed_embed_kernel, num_classes=num_classes, pack=pack)

    out = pl.pallas_call(
        kernel,
        out_shape=jax.ShapeDtypeStruct((n_rows_pad, packed_dim), out_dtype),
        grid=(n_tiles,),
        in_specs=[
            pl.BlockSpec((tile_rows, pack), lambda i: (i, 0)),
            pl.BlockSpec((n_slots, packed_dim), lambda i: (0, 0)),
        ],
        out_specs=pl.BlockSpec((tile_rows, packed_dim), lambda i: (i, 0)),
        compiler_params=pltpu.CompilerParams(
            dimension_semantics=("parallel",),
            vmem_limit_bytes=vmem_limit,
        ),
        cost_estimate=cost,
    )(idx2d, w_packed)

    # (R, pack*embed_dim) -> (R*pack, embed_dim): row-major reinterpretation.
    out = out.reshape(n_rows_pad * pack, embed_dim)
    if pad:
        out = out[:n]
    return out.reshape(*orig_shape, embed_dim)


def lulc_embedding_forward(x, weight, *, pack=None, max_tile_rows=8192,
                           out_dtype=None):
    """Equivalent of CustomLULCEmbedding.forward(x) == weight[x].

    out_dtype=None keeps the exact weight dtype (f32 gather).  Passing
    jnp.bfloat16 halves HBM write traffic on the write-bound roofline but
    rounds every embedding to bf16 — an explicit numerics decision.
    """
    _, embed_dim = weight.shape
    if pack is None:
        pack = _default_pack(embed_dim)
    return _lulc_embedding_impl(
        x, weight, pack=int(pack), max_tile_rows=int(max_tile_rows),
        out_dtype=out_dtype)


def init_lulc_embedding_params(key, num_lulc_classes, lulc_embed_dim):
    """Deterministic init mirroring nn.Embedding (N(0,1)) with row 0 zeroed."""
    w = jax.random.normal(key, (num_lulc_classes, lulc_embed_dim), dtype=jnp.float32)
    w = w.at[0].set(0.0)  # self.lulc_embedding.weight.data[0].fill_(0)
    return w


if __name__ == "__main__":
    num_lulc_classes = 16
    lulc_embed_dim = 32

    key = jax.random.PRNGKey(0)
    k_w, k_x = jax.random.split(key)

    weight = init_lulc_embedding_params(k_w, num_lulc_classes, lulc_embed_dim)

    # LULC class-id map, e.g. (batch, H, W) integer indices.
    x = jax.random.randint(k_x, (2, 16, 16), 0, num_lulc_classes, dtype=jnp.int32)

    out = lulc_embedding_forward(x, weight)
    out = jax.block_until_ready(out)

    # Correctness check against plain-JAX embedding lookup.
    ref = jnp.take(weight, x, axis=0)
    assert out.shape == (2, 16, 16, lulc_embed_dim), out.shape
    assert jnp.allclose(out, ref, atol=1e-6), "mismatch vs reference embedding lookup"

    print("KERNEL_OK")
</pallas_src>

<mosaic_0001>
module attributes {stable_mosaic.version = 11 : i64} {
  func.func @_packed_embed_kernel(%arg0: i32, %arg1: memref<64x4xi32, #tpu.memory_space<vmem>>, %arg2: memref<64x128xf32, #tpu.memory_space<vmem>>, %arg3: memref<64x128xf32, #tpu.memory_space<vmem>>) attributes {dimension_semantics = [#tpu.dimension_semantics<parallel>], iteration_bounds = array<i64: 2>, scalar_prefetch = 0 : i64, scratch_operands = 0 : i64, tpu.core_type = #tpu.core_type<tc>, window_params = [{transform_indices = @transform_0, window_bounds = array<i64: 64, 4>}, {pipeline_mode = #tpu.pipeline_mode<synchronous>, transform_indices = @transform_1, window_bounds = array<i64: 64, 128>}, {transform_indices = @transform_2, window_bounds = array<i64: 64, 128>}]} {
    %c0 = arith.constant 0 : index
    %c0_0 = arith.constant 0 : index
    %0 = vector.load %arg1[%c0, %c0_0] : memref<64x4xi32, #tpu.memory_space<vmem>>, vector<64x4xi32>
    %1 = tpu.iota {dimensions = array<i32: 1>} : vector<1x4xi32>
    %2 = vector.shape_cast %1 : vector<1x4xi32> to vector<4xi32>
    %c16_i32 = arith.constant 16 : i32
    %3 = vector.broadcast %c16_i32 : i32 to vector<4xi32>
    %4 = arith.muli %2, %3 : vector<4xi32>
    %5 = vector.shape_cast %4 : vector<4xi32> to vector<1x4xi32>
    %c0_i32 = arith.constant 0 : i32
    %6 = vector.broadcast %c0_i32 : i32 to vector<64x4xi32>
    %7 = arith.cmpi sge, %0, %6 : vector<64x4xi32>
    %c16_i32_1 = arith.constant 16 : i32
    %8 = vector.broadcast %c16_i32_1 : i32 to vector<64x4xi32>
    %9 = arith.cmpi slt, %0, %8 : vector<64x4xi32>
    %10 = arith.andi %7, %9 : vector<64x4xi1>
    %11 = vector.broadcast %5 : vector<1x4xi32> to vector<64x4xi32>
    %12 = arith.addi %0, %11 : vector<64x4xi32>
    %c-1_i32 = arith.constant -1 : i32
    %13 = vector.broadcast %c-1_i32 : i32 to vector<64x4xi32>
    %14 = arith.select %10, %12, %13 : vector<64x4xi1>, vector<64x4xi32>
    %15 = tpu.iota {dimensions = array<i32: 1>} : vector<64x64xi32>
    %16 = vector.extract_strided_slice %14 {offsets = [0, 0], sizes = [64, 1], strides = [1, 1]} : vector<64x4xi32> to vector<64x1xi32>
    %17 = vector.broadcast %16 : vector<64x1xi32> to vector<64x64xi32>
    %18 = arith.cmpi eq, %15, %17 : vector<64x64xi32>
    %19 = vector.extract_strided_slice %14 {offsets = [0, 1], sizes = [64, 1], strides = [1, 1]} : vector<64x4xi32> to vector<64x1xi32>
    %20 = vector.broadcast %19 : vector<64x1xi32> to vector<64x64xi32>
    %21 = arith.cmpi eq, %15, %20 : vector<64x64xi32>
    %22 = arith.ori %18, %21 : vector<64x64xi1>
    %23 = vector.extract_strided_slice %14 {offsets = [0, 2], sizes = [64, 1], strides = [1, 1]} : vector<64x4xi32> to vector<64x1xi32>
    %24 = vector.broadcast %23 : vector<64x1xi32> to vector<64x64xi32>
    %25 = arith.cmpi eq, %15, %24 : vector<64x64xi32>
    %26 = arith.ori %22, %25 : vector<64x64xi1>
    %27 = vector.extract_strided_slice %14 {offsets = [0, 3], sizes = [64, 1], strides = [1, 1]} : vector<64x4xi32> to vector<64x1xi32>
    %28 = vector.broadcast %27 : vector<64x1xi32> to vector<64x64xi32>
    %29 = arith.cmpi eq, %15, %28 : vector<64x64xi32>
    %30 = arith.ori %26, %29 : vector<64x64xi1>
    %31 = arith.extui %30 : vector<64x64xi1> to vector<64x64xi32>
    %32 = arith.sitofp %31 : vector<64x64xi32> to vector<64x64xf32>
    %c0_2 = arith.constant 0 : index
    %c0_3 = arith.constant 0 : index
    %33 = vector.load %arg2[%c0_2, %c0_3] : memref<64x128xf32, #tpu.memory_space<vmem>>, vector<64x128xf32>
    %cst = arith.constant dense<0.000000e+00> : vector<64x128xf32>
    %34 = tpu.matmul %32, %33, %cst {dimension_numbers = #tpu.dot_dimension_numbers<[1], [0], [0], [1], [0, 0, 1, 1], [], []>} : vector<64x64xf32>, vector<64x128xf32>, vector<64x128xf32> -> vector<64x128xf32>
    %c0_4 = arith.constant 0 : index
    %c0_5 = arith.constant 0 : index
    %35 = vector.load %arg3[%c0_4, %c0_5] : memref<64x128xf32, #tpu.memory_space<vmem>>, vector<64x128xf32>
    tpu.vector_store %arg3[%c0_4, %c0_5], %34 {strides = array<i32>} : memref<64x128xf32, #tpu.memory_space<vmem>>, vector<64x128xf32>,
    return
  }
  func.func @transform_0(%arg0: i32) -> (i32, i32) {
    %c0_i32 = arith.constant 0 : i32
    %c0_i32_0 = arith.constant 0 : i32
    return %arg0, %c0_i32 : i32, i32
  }
  func.func @transform_1(%arg0: i32) -> (i32, i32) {
    %c0_i32 = arith.constant 0 : i32
    %c0_i32_0 = arith.constant 0 : i32
    %c0_i32_1 = arith.constant 0 : i32
    return %c0_i32, %c0_i32_0 : i32, i32
  }
  func.func @transform_2(%arg0: i32) -> (i32, i32) {
    %c0_i32 = arith.constant 0 : i32
    %c0_i32_0 = arith.constant 0 : i32
    return %arg0, %c0_i32 : i32, i32
  }
}

</mosaic_0001>

<llo_original>
// kernel: _lulc_embedding_impl.1
$region0: #{_lulc_embedding_impl.1}
  #allocation0 [shape = 'u32[]', space=smem, size = 0x4, offset = 0x4, fixed_abs, tag = 'smem constant byte address 0x4 - core index']
  #allocation1 [shape = 'u32[72,128]{1,0:T(1,128)}', space=vmem, size = 0x9000, scoped, tag = 'internal scratch']
  %s0 = inlined_call_operand.vmem [shape: s32[128,4], index: 0, kind: input, shape index: {}]
  %s1 = inlined_call_operand.vmem [shape: f32[64,128], index: 1, kind: input, shape index: {}]
  %s2 = inlined_call_operand.vmem [shape: f32[128,128], index: 2, kind: output, shape index: {}]
  %s3 = sld [smem:[#allocation0]]
  $region41: #{_lulc_embedding_impl.1} parent=0
    _
  %s5 = ssub.s32 1, %s3
  %s6 = scalar_select 0, %s5, %s3
  loop: start=0, step=1, limit=4
  $region2: #{_lulc_embedding_impl.1} parent=0 // loop_pre_header
    _
  $region3: #{_lulc_embedding_impl.1} parent=0 // loop_header
    %s8 = sphi 0, %s12
    %p9 = scmp.ge.s32.totalorder %s8, 4
    %s18 = sphi 0, %s20
    %s21 = sphi 0, %s18
    %s22 = sphi 0, %s21
    %s38 = sphi 0, %s22
    %s42 = sphi 0, %s42
    %s44 = sphi 0, %s42
    %s45 = sphi 0, %s44
    %s59 = sphi 0, %s45
    %s65 = sphi 0, %s67
    %s68 = sphi 0, %s65
    %s69 = sphi 0, %s68
    %s85 = sphi 0, %s69
  $region4: #{_lulc_embedding_impl.1} parent=0 // loop_header_branch
    %11 = sbr.rel (%p9) target = $region8
  $region5: #{_lulc_embedding_impl.1} parent=0 // loop_body
    %s13 = ssub.s32 %s8, 1
    %s14 = ssub.s32 %s8, 2
    %s15 = sadd.s32 %s8, 1
    %s16 = ssub.s32 %s8, %s15
    %p17 = scmp.eq.s32.totalorder %s16, 0
    %s19 = sadd.s32 %s18, 1
    %s20 = scalar_select %p17, %s18, %s19
    %p23 = pneg %p17
    %p24 = scmp.eq.s32.totalorder %s8, 1
    %p25 = por %p23, %p24
    %p26 = scmp.ne.s32.totalorder %s18, %s21
    %p27 = scmp.eq.s32.totalorder %s8, 0
    %p28 = por %p26, %p27
    %p29 = scmp.ne.s32.totalorder %s18, %s21
    %p30 = scmp.eq.s32.totalorder %s13, 1
    %p31 = por %p29, %p30
    %p32 = scmp.ne.s32.totalorder %s21, %s22
    %p33 = scmp.eq.s32.totalorder %s13, 0
    %p34 = por %p32, %p33
    %p35 = scmp.ne.s32.totalorder %s21, %s22
    %p36 = scmp.eq.s32.totalorder %s14, 1
    %p37 = por %p35, %p36
    %p39 = scmp.ne.s32.totalorder %s22, %s38
    %p40 = scmp.eq.s32.totalorder %s14, 0
    %p41 = por %p39, %p40
    %s43 = sadd.s32 %s42, 1
    %p46 = scmp.eq.s32.totalorder %s8, 1
    %p47 = scmp.ne.s32.totalorder %s42, %s44
    %p48 = scmp.eq.s32.totalorder %s8, 0
    %p49 = por %p47, %p48
    %p50 = scmp.ne.s32.totalorder %s42, %s44
    %p51 = scmp.eq.s32.totalorder %s13, 1
    %p52 = por %p50, %p51
    %p53 = scmp.ne.s32.totalorder %s44, %s45
    %p54 = scmp.eq.s32.totalorder %s13, 0
    %p55 = por %p53, %p54
    %p56 = scmp.ne.s32.totalorder %s44, %s45
    %p57 = scmp.eq.s32.totalorder %s14, 1
    %p58 = por %p56, %p57
    %p60 = scmp.ne.s32.totalorder %s45, %s59
    %p61 = scmp.eq.s32.totalorder %s14, 0
    %p62 = por %p60, %p61
    %s63 = ssub.s32 %s8, %s15
    %p64 = scmp.eq.s32.totalorder %s63, 0
    %s66 = sadd.s32 %s65, 1
    %s67 = scalar_select %p64, %s65, %s66
    %p70 = pneg %p64
    %p71 = scmp.eq.s32.totalorder %s8, 1
    %p72 = por %p70, %p71
    %p73 = scmp.ne.s32.totalorder %s65, %s68
    %p74 = scmp.eq.s32.totalorder %s8, 0
    %p75 = por %p73, %p74
    %p76 = scmp.ne.s32.totalorder %s65, %s68
    %p77 = scmp.eq.s32.totalorder %s13, 1
    %p78 = por %p76, %p77
    %p79 = scmp.ne.s32.totalorder %s68, %s69
    %p80 = scmp.eq.s32.totalorder %s13, 0
    %p81 = por %p79, %p80
    %p82 = scmp.ne.s32.totalorder %s68, %s69
    %p83 = scmp.eq.s32.totalorder %s14, 1
    %p84 = por %p82, %p83
    %p86 = scmp.ne.s32.totalorder %s69, %s85
    %p87 = scmp.eq.s32.totalorder %s14, 0
    %p88 = por %p86, %p87
    %p89 = scmp.le.s32.totalorder 1, %s8
    %p90 = scmp.lt.s32.totalorder %s8, 3
    %p91 = pnand %p89, %p90
    %p92 = pneg %p91
    // Predicated region
    $region9: #{_lulc_embedding_impl.1} parent=5 // pred_check
      _
    $region10: #{_lulc_embedding_impl.1} parent=5 // pred_check_branch
      %94 = sbr.rel (%p91) target = $region12
    $region11: #{_lulc_embedding_impl.1} parent=5 // pred_region
      %s95 = ssub.s32 %s8, 1
      // Predicated region
      $region13: #{_lulc_embedding_impl.1} parent=11 // pred_check
        %p96 = pneg %p55
      $region14: #{_lulc_embedding_impl.1} parent=11 // pred_check_branch
        %98 = sbr.rel (%p96) target = $region16
      $region15: #{_lulc_embedding_impl.1} parent=11 // pred_region
        _
      $region16: #{_lulc_embedding_impl.1} parent=11 // pred_fallthru
        _
    $region12: #{_lulc_embedding_impl.1} parent=5 // pred_fallthru
      _
    %p99 = scmp.lt.s32.totalorder %s8, 2
    // Predicated region
    $region17: #{_lulc_embedding_impl.1} parent=5 // pred_check
      %p100 = pneg %p99
    $region18: #{_lulc_embedding_impl.1} parent=5 // pred_check_branch
      %102 = sbr.rel (%p100) target = $region20
    $region19: #{_lulc_embedding_impl.1} parent=5 // pred_region
      // Predicated region
      $region21: #{_lulc_embedding_impl.1} parent=19 // pred_check
        %p103 = pneg %p28
      $region22: #{_lulc_embedding_impl.1} parent=19 // pred_check_branch
        %105 = sbr.rel (%p103) target = $region24
      $region23: #{_lulc_embedding_impl.1} parent=19 // pred_region
        %s106 = smul.u32 8, %s8
        %p107 = scmp.lt.s32.totalorder %s106, 15
        %s108 = scalar_select %p107, %s106, 15
        %s109 = smul.addr %s108, 8
        %s110 = scalar_lea.vmem %s0, %s109
        %s111 = smul.u32 8, %s8
      $region24: #{_lulc_embedding_impl.1} parent=19 // pred_fallthru
        _
    $region20: #{_lulc_embedding_impl.1} parent=5 // pred_fallthru
      _
    %p112 = scmp.le.s32.totalorder 1, %s8
    %p113 = scmp.lt.s32.totalorder %s8, 3
    %p114 = pnand %p112, %p113
    %p115 = pneg %p114
    // Predicated region
    $region25: #{_lulc_embedding_impl.1} parent=5 // pred_check
      _
    $region26: #{_lulc_embedding_impl.1} parent=5 // pred_check_branch
      %117 = sbr.rel (%p114) target = $region28
    $region27: #{_lulc_embedding_impl.1} parent=5 // pred_region
      %s118 = ssub.s32 %s8, 1
      %s119 = smul.u32 8, %s13
      %p120 = scmp.lt.s32.totalorder %s119, 15
      %s121 = scalar_select %p120, %s119, 15
      %s122 = smul.addr %s121, 8
      %s123 = scalar_lea.vmem %s0, %s122
      %p124 = pneg %p34
      %p125 = pneg %p31
      %p126 = pneg %p55
      %p127 = pneg %p52
      %p128 = pneg %p81
      %p129 = pneg %p78
      %s130 = smul.u32 8, %s13
      %p131 = scmp.lt.s32.totalorder %s130, 15
      %s132 = scalar_select %p131, %s130, 15
      %s133 = smul.addr %s132, 8
      %s134 = scalar_lea.vmem %s2, %s133
      %s135 = smul.u32 8, %s13
      %p136 = scmp.lt.s32.totalorder %s135, 15
      %s137 = scalar_select %p136, %s135, 15
      %s138 = smul.addr %s137, 8
      %s139 = scalar_lea.vmem %s0, %s138
      %s140 = smul.u32 8, %s13
      %s141 = smul.u32 8, %s13
      %p142 = scmp.lt.s32.totalorder %s141, 15
      %s143 = scalar_select %p142, %s141, 15
      %s144 = smul.addr %s143, 8
      %s145 = scalar_lea.vmem %s2, %s144
      %s146 = smul.u32 8, %s13
      %v147 = vld [vmem:[%s139] sm:$0xff]
      %v148 = vld [vmem:[%s139 + $0x8] sm:$0xff]
      %v149 = vld [vmem:[%s139 + $0x10] sm:$0xff]
      %v150 = vld [vmem:[%s139 + $0x18] sm:$0xff]
      %v151 = vld [vmem:[%s139 + $0x20] sm:$0xff]
      %v152 = vld [vmem:[%s139 + $0x28] sm:$0xff]
      %v153 = vld [vmem:[%s139 + $0x30] sm:$0xff]
      %v154 = vld [vmem:[%s139 + $0x38] sm:$0xff]
      %v155 = vlaneseq
      %v156 = vand.u32 %v155, 127
      %v157 = vmul.u32 %v156, 16
      %vm158 = vcmp.ge.s32.totalorder %v147, 0
      %vm159 = vcmp.ge.s32.totalorder %v148, 0
      %vm160 = vcmp.ge.s32.totalorder %v149, 0
      %vm161 = vcmp.ge.s32.totalorder %v150, 0
      %vm162 = vcmp.ge.s32.totalorder %v151, 0
      %vm163 = vcmp.ge.s32.totalorder %v152, 0
      %vm164 = vcmp.ge.s32.totalorder %v153, 0
      %vm165 = vcmp.ge.s32.totalorder %v154, 0
      %vm166 = vcmp.lt.s32.totalorder %v147, 16
      %vm167 = vcmp.lt.s32.totalorder %v148, 16
      %vm168 = vcmp.lt.s32.totalorder %v149, 16
      %vm169 = vcmp.lt.s32.totalorder %v150, 16
      %vm170 = vcmp.lt.s32.totalorder %v151, 16
      %vm171 = vcmp.lt.s32.totalorder %v152, 16
      %vm172 = vcmp.lt.s32.totalorder %v153, 16
      %vm173 = vcmp.lt.s32.totalorder %v154, 16
      %vm174 = vmand %vm158, %vm166
      %vm175 = vmand %vm159, %vm167
      %vm176 = vmand %vm160, %vm168
      %vm177 = vmand %vm161, %vm169
      %vm178 = vmand %vm162, %vm170
      %vm179 = vmand %vm163, %vm171
      %vm180 = vmand %vm164, %vm172
      %vm181 = vmand %vm165, %vm173
      %v182 = vadd.s32 %v147, %v157
      %v183 = vadd.s32 %v148, %v157
      %v184 = vadd.s32 %v149, %v157
      %v185 = vadd.s32 %v150, %v157
      %v186 = vadd.s32 %v151, %v157
      %v187 = vadd.s32 %v152, %v157
      %v188 = vadd.s32 %v153, %v157
      %v189 = vadd.s32 %v154, %v157
      %v190 = vsel %vm174, %v182, 4294967295
      %v191 = vsel %vm175, %v183, 4294967295
      %v192 = vsel %vm176, %v184, 4294967295
      %v193 = vsel %vm177, %v185, 4294967295
      %v194 = vsel %vm178, %v186, 4294967295
      %v195 = vsel %vm179, %v187, 4294967295
      %v196 = vsel %vm180, %v188, 4294967295
      %v197 = vsel %vm181, %v189, 4294967295
      %198 = vset.pattern.permute.xlu0 0
      %199 = vperm.xlu0 %198, %v190
      %v200 = vpop.permute.xlu0 %199
      %201 = vset.pattern.permute.xlu0 0
      %202 = vperm.xlu0 %201, %v191
      %v203 = vpop.permute.xlu0 %202
      %204 = vset.pattern.permute.xlu0 0
      %205 = vperm.xlu0 %204, %v192
      %v206 = vpop.permute.xlu0 %205
      %207 = vset.pattern.permute.xlu0 0
      %208 = vperm.xlu0 %207, %v193
      %v209 = vpop.permute.xlu0 %208
      %210 = vset.pattern.permute.xlu0 0
      %211 = vperm.xlu0 %210, %v194
      %v212 = vpop.permute.xlu0 %211
      %213 = vset.pattern.permute.xlu0 0
      %214 = vperm.xlu0 %213, %v195
      %v215 = vpop.permute.xlu0 %214
      %216 = vset.pattern.permute.xlu0 0
      %217 = vperm.xlu0 %216, %v196
      %v218 = vpop.permute.xlu0 %217
      %219 = vset.pattern.permute.xlu0 0
      %220 = vperm.xlu0 %219, %v197
      %v221 = vpop.permute.xlu0 %220
      %vm222 = vcmp.eq.s32.totalorder %v156, %v200
      %vm223 = vcmp.eq.s32.totalorder %v156, %v203
      %vm224 = vcmp.eq.s32.totalorder %v156, %v206
      %vm225 = vcmp.eq.s32.totalorder %v156, %v209
      %vm226 = vcmp.eq.s32.totalorder %v156, %v212
      %vm227 = vcmp.eq.s32.totalorder %v156, %v215
      %vm228 = vcmp.eq.s32.totalorder %v156, %v218
      %vm229 = vcmp.eq.s32.totalorder %v156, %v221
      %230 = vset.pattern.permute.xlu0 1
      %231 = vperm.xlu0 %230, %v190
      %v232 = vpop.permute.xlu0 %231
      %233 = vset.pattern.permute.xlu0 1
      %234 = vperm.xlu0 %233, %v191
      %v235 = vpop.permute.xlu0 %234
      %236 = vset.pattern.permute.xlu0 1
      %237 = vperm.xlu0 %236, %v192
      %v238 = vpop.permute.xlu0 %237
      %239 = vset.pattern.permute.xlu0 1
      %240 = vperm.xlu0 %239, %v193
      %v241 = vpop.permute.xlu0 %240
      %242 = vset.pattern.permute.xlu0 1
      %243 = vperm.xlu0 %242, %v194
      %v244 = vpop.permute.xlu0 %243
      %245 = vset.pattern.permute.xlu0 1
      %246 = vperm.xlu0 %245, %v195
      %v247 = vpop.permute.xlu0 %246
      %248 = vset.pattern.permute.xlu0 1
      %249 = vperm.xlu0 %248, %v196
      %v250 = vpop.permute.xlu0 %249
      %251 = vset.pattern.permute.xlu0 1
      %252 = vperm.xlu0 %251, %v197
      %v253 = vpop.permute.xlu0 %252
      %vm254 = vcmp.eq.s32.totalorder %v156, %v232
      %vm255 = vcmp.eq.s32.totalorder %v156, %v235
      %vm256 = vcmp.eq.s32.totalorder %v156, %v238
      %vm257 = vcmp.eq.s32.totalorder %v156, %v241
      %vm258 = vcmp.eq.s32.totalorder %v156, %v244
      %vm259 = vcmp.eq.s32.totalorder %v156, %v247
      %vm260 = vcmp.eq.s32.totalorder %v156, %v250
      %vm261 = vcmp.eq.s32.totalorder %v156, %v253
      %vm262 = vmor %vm222, %vm254
      %vm263 = vmor %vm223, %vm255
      %vm264 = vmor %vm224, %vm256
      %vm265 = vmor %vm225, %vm257
      %vm266 = vmor %vm226, %vm258
      %vm267 = vmor %vm227, %vm259
      %vm268 = vmor %vm228, %vm260
      %vm269 = vmor %vm229, %vm261
      %270 = vset.pattern.permute.xlu0 2
      %271 = vperm.xlu0 %270, %v190
      %v272 = vpop.permute.xlu0 %271
      %273 = vset.pattern.permute.xlu0 2
      %274 = vperm.xlu0 %273, %v191
      %v275 = vpop.permute.xlu0 %274
      %276 = vset.pattern.permute.xlu0 2
      %277 = vperm.xlu0 %276, %v192
      %v278 = vpop.permute.xlu0 %277
      %279 = vset.pattern.permute.xlu0 2
      %280 = vperm.xlu0 %279, %v193
      %v281 = vpop.permute.xlu0 %280
      %282 = vset.pattern.permute.xlu0 2
      %283 = vperm.xlu0 %282, %v194
      %v284 = vpop.permute.xlu0 %283
      %285 = vset.pattern.permute.xlu0 2
      %286 = vperm.xlu0 %285, %v195
      %v287 = vpop.permute.xlu0 %286
      %288 = vset.pattern.permute.xlu0 2
      %289 = vperm.xlu0 %288, %v196
      %v290 = vpop.permute.xlu0 %289
      %291 = vset.pattern.permute.xlu0 2
      %292 = vperm.xlu0 %291, %v197
      %v293 = vpop.permute.xlu0 %292
      %vm294 = vcmp.eq.s32.totalorder %v156, %v272
      %vm295 = vcmp.eq.s32.totalorder %v156, %v275
      %vm296 = vcmp.eq.s32.totalorder %v156, %v278
      %vm297 = vcmp.eq.s32.totalorder %v156, %v281
      %vm298 = vcmp.eq.s32.totalorder %v156, %v284
      %vm299 = vcmp.eq.s32.totalorder %v156, %v287
      %vm300 = vcmp.eq.s32.totalorder %v156, %v290
      %vm301 = vcmp.eq.s32.totalorder %v156, %v293
      %vm302 = vmor %vm262, %vm294
      %vm303 = vmor %vm263, %vm295
      %vm304 = vmor %vm264, %vm296
      %vm305 = vmor %vm265, %vm297
      %vm306 = vmor %vm266, %vm298
      %vm307 = vmor %vm267, %vm299
      %vm308 = vmor %vm268, %vm300
      %vm309 = vmor %vm269, %vm301
      %310 = vset.pattern.permute.xlu0 3
      %311 = vperm.xlu0 %310, %v190
      %v312 = vpop.permute.xlu0 %311
      %313 = vset.pattern.permute.xlu0 3
      %314 = vperm.xlu0 %313, %v191
      %v315 = vpop.permute.xlu0 %314
      %316 = vset.pattern.permute.xlu0 3
      %317 = vperm.xlu0 %316, %v192
      %v318 = vpop.permute.xlu0 %317
      %319 = vset.pattern.permute.xlu0 3
      %320 = vperm.xlu0 %319, %v193
      %v321 = vpop.permute.xlu0 %320
      %322 = vset.pattern.permute.xlu0 3
      %323 = vperm.xlu0 %322, %v194
      %v324 = vpop.permute.xlu0 %323
      %325 = vset.pattern.permute.xlu0 3
      %326 = vperm.xlu0 %325, %v195
      %v327 = vpop.permute.xlu0 %326
      %328 = vset.pattern.permute.xlu0 3
      %329 = vperm.xlu0 %328, %v196
      %v330 = vpop.permute.xlu0 %329
      %331 = vset.pattern.permute.xlu0 3
      %332 = vperm.xlu0 %331, %v197
      %v333 = vpop.permute.xlu0 %332
      %vm334 = vcmp.eq.s32.totalorder %v156, %v312
      %vm335 = vcmp.eq.s32.totalorder %v156, %v315
      %vm336 = vcmp.eq.s32.totalorder %v156, %v318
      %vm337 = vcmp.eq.s32.totalorder %v156, %v321
      %vm338 = vcmp.eq.s32.totalorder %v156, %v324
      %vm339 = vcmp.eq.s32.totalorder %v156, %v327
      %vm340 = vcmp.eq.s32.totalorder %v156, %v330
      %vm341 = vcmp.eq.s32.totalorder %v156, %v333
      %vm342 = vmor %vm302, %vm334
      %vm343 = vmor %vm303, %vm335
      %vm344 = vmor %vm304, %vm336
      %vm345 = vmor %vm305, %vm337
      %vm346 = vmor %vm306, %vm338
      %vm347 = vmor %vm307, %vm339
      %vm348 = vmor %vm308, %vm340
      %vm349 = vmor %vm309, %vm341
      %v350 = vsel %vm342, 1, 0
      %v351 = vsel %vm343, 1, 0
      %v352 = vsel %vm344, 1, 0
      %v353 = vsel %vm345, 1, 0
      %v354 = vsel %vm346, 1, 0
      %v355 = vsel %vm347, 1, 0
      %v356 = vsel %vm348, 1, 0
      %v357 = vsel %vm349, 1, 0
      %v358 = vcvt.s32.f32 %v350
      %v359 = vcvt.s32.f32 %v351
      %v360 = vcvt.s32.f32 %v352
      %v361 = vcvt.s32.f32 %v353
      %v362 = vcvt.s32.f32 %v354
      %v363 = vcvt.s32.f32 %v355
      %v364 = vcvt.s32.f32 %v356
      %v365 = vcvt.s32.f32 %v357
      %v366 = vld [vmem:[%s1] sm:$0xff]
      %v367 = vld [vmem:[%s1 + $0x8] sm:$0xff]
      %v368 = vld [vmem:[%s1 + $0x10] sm:$0xff]
      %v369 = vld [vmem:[%s1 + $0x18] sm:$0xff]
      %v370 = vld [vmem:[%s1 + $0x20] sm:$0xff]
      %v371 = vld [vmem:[%s1 + $0x28] sm:$0xff]
      %v372 = vld [vmem:[%s1 + $0x30] sm:$0xff]
      %v373 = vld [vmem:[%s1 + $0x38] sm:$0xff]
      %vm374 = vcmask 523264
      %v376 = vsel %vm374, %v358, 0
      %v379 = vsel %vm374, %v359, 0
      %v382 = vsel %vm374, %v360, 0
      %v385 = vsel %vm374, %v361, 0
      %v388 = vsel %vm374, %v362, 0
      %v391 = vsel %vm374, %v363, 0
      %v394 = vsel %vm374, %v364, 0
      %v397 = vsel %vm374, %v365, 0
      %399 = vmatpush.msra.mxu0 0.0
      %400 = vmatpush.msra.mxu0 0.0
      %401 = vmatpush.msra.mxu0 0.0
      %402 = vmatpush.msra.mxu0 0.0
      %403 = vmatpush.msra.mxu0 0.0
      %404 = vmatpush.msra.mxu0 0.0
      %405 = vmatpush.msra.mxu0 0.0
      %406 = vmatpush.msra.mxu0 0.0
      %407 = vmatpush.msra.mxu0 %v373
      %408 = vmatpush.msra.mxu0 %v372
      %409 = vmatpush.msra.mxu0 %v371
      %410 = vmatpush.msra.mxu0 %v370
      %411 = vmatpush.msra.mxu0 %v369
      %412 = vmatpush.msra.mxu0 %v368
      %413 = vmatpush.msra.mxu0 %v367
      %414 = vmatpush.msra.mxu0 %v366
      %415 = vmatmul.f32.gmra.mxu0 %v376
      %v416 = vpop.f32.mrf.mxu0
      %v417 = vadd.f32 0.0, %v416
      %418 = vmatmul.f32.gmra.mxu0 %v379
      %v419 = vpop.f32.mrf.mxu0
      %v420 = vadd.f32 0.0, %v419
      %421 = vmatmul.f32.gmra.mxu0 %v382
      %v422 = vpop.f32.mrf.mxu0
      %v423 = vadd.f32 0.0, %v422
      %424 = vmatmul.f32.gmra.mxu0 %v385
      %v425 = vpop.f32.mrf.mxu0
      %v426 = vadd.f32 0.0, %v425
      %427 = vmatmul.f32.gmra.mxu0 %v388
      %v428 = vpop.f32.mrf.mxu0
      %v429 = vadd.f32 0.0, %v428
      %430 = vmatmul.f32.gmra.mxu0 %v391
      %v431 = vpop.f32.mrf.mxu0
      %v432 = vadd.f32 0.0, %v431
      %433 = vmatmul.f32.gmra.mxu0 %v394
      %v434 = vpop.f32.mrf.mxu0
      %v435 = vadd.f32 0.0, %v434
      %436 = vmatmul.f32.gmra.mxu0 %v397
      %v437 = vpop.f32.mrf.mxu0
      %v438 = vadd.f32 0.0, %v437
      %439 = vdwg.mxu0
      %440 = vst [vmem:[%s145] sm:$0xff] %v417
      %441 = vst [vmem:[%s145 + $0x8] sm:$0xff] %v420
      %442 = vst [vmem:[%s145 + $0x10] sm:$0xff] %v423
      %443 = vst [vmem:[%s145 + $0x18] sm:$0xff] %v426
      %444 = vst [vmem:[%s145 + $0x20] sm:$0xff] %v429
      %445 = vst [vmem:[%s145 + $0x28] sm:$0xff] %v432
      %446 = vst [vmem:[%s145 + $0x30] sm:$0xff] %v435
      %447 = vst [vmem:[%s145 + $0x38] sm:$0xff] %v438
      %s448 = smul.u32 8, %s13
      %p449 = scmp.lt.s32.totalorder %s448, 15
      %s450 = scalar_select %p449, %s448, 15
      %s451 = smul.addr %s450, 8
      %s452 = scalar_lea.vmem %s2, %s451
      // Predicated region
      $region29: #{_lulc_embedding_impl.1} parent=27 // pred_check
        %p453 = pneg %p78
      $region30: #{_lulc_embedding_impl.1} parent=27 // pred_check_branch
        %455 = sbr.rel (%p453) target = $region32
      $region31: #{_lulc_embedding_impl.1} parent=27 // pred_region
        %s456 = smul.u32 8, %s13
      $region32: #{_lulc_embedding_impl.1} parent=27 // pred_fallthru
        _
    $region28: #{_lulc_embedding_impl.1} parent=5 // pred_fallthru
      _
    %p457 = scmp.le.s32.totalorder 2, %s8
    // Predicated region
    $region33: #{_lulc_embedding_impl.1} parent=5 // pred_check
      %p458 = pneg %p457
    $region34: #{_lulc_embedding_impl.1} parent=5 // pred_check_branch
      %460 = sbr.rel (%p458) target = $region36
    $region35: #{_lulc_embedding_impl.1} parent=5 // pred_region
      %s461 = ssub.s32 %s8, 2
      // Predicated region
      $region37: #{_lulc_embedding_impl.1} parent=35 // pred_check
        %p462 = pneg %p84
      $region38: #{_lulc_embedding_impl.1} parent=35 // pred_check_branch
        %464 = sbr.rel (%p462) target = $region40
      $region39: #{_lulc_embedding_impl.1} parent=35 // pred_region
        %s465 = smul.u32 8, %s14
        %p466 = scmp.lt.s32.totalorder %s465, 15
        %s467 = scalar_select %p466, %s465, 15
        %s468 = smul.addr %s467, 8
        %s469 = scalar_lea.vmem %s2, %s468
      $region40: #{_lulc_embedding_impl.1} parent=35 // pred_fallthru
        _
    $region36: #{_lulc_embedding_impl.1} parent=5 // pred_fallthru
      _
  $region6: #{_lulc_embedding_impl.1} parent=0 // loop_footer
    %s12 = sadd.s32 1, %s8
  $region7: #{_lulc_embedding_impl.1} parent=0 // loop_footer_branch
    %7 = sbr.rel target = $region3
  $region8: #{_lulc_embedding_impl.1} parent=0 // loop_exit
    _

</llo_original>
